<compile_context>
chip_gen: v5e
topology: v5e:2x2
jax: 0.10.0
libtpu: 0.0.40
codegen_flags: <defaults>
</compile_context>

<pallas_src>
import jax
import jax.numpy as jnp
from jax.experimental import pallas as pl
from jax.experimental.pallas import tpu as pltpu

N, C_IN, H, W = 1, 3, 16, 16
C1, C2 = 16, 32
K = 3 * 3 * C_IN          # im2col patch width for the 3x3 conv
P = N * H * W             # flattened (n, h, w) positions
EPS = 1e-5


def fused_kernel(patches_ref, w1_ref, b1_ref, w2_ref, b2_ref,
                 gamma_ref, beta_ref, out_ref):
    # --- self.conv: 3x3 conv (padding=1) as im2col matmul, transposed layout:
    #     (C1, K) @ (K, P) -> (C1, P), lane-dense along P = 256.
    y1 = jnp.dot(w1_ref[...], patches_ref[...],
                 preferred_element_type=jnp.float32) + b1_ref[...]
    # --- x545.transpose(0, 2): pure layout permutation (handled in wrapper);
    #     ReLU commutes with it.
    y1 = jnp.maximum(y1, 0.0)
    # --- self.conv1: 1x1 conv == per-position channel matmul:
    #     (C2, C1) @ (C1, P) -> (C2, P).
    y2 = jnp.dot(w2_ref[...], y1,
                 preferred_element_type=jnp.float32) + b2_ref[...]
    # --- self.bn1: training-mode BatchNorm2d with per-channel batch stats over
    #     the P axis; single pass (sum, sum of squares), biased variance.
    inv_p = 1.0 / float(P)
    mean = jnp.sum(y2, axis=1, keepdims=True) * inv_p              # (C2, 1)
    ex2 = jnp.sum(y2 * y2, axis=1, keepdims=True) * inv_p          # (C2, 1)
    var = ex2 - mean * mean
    scale = jax.lax.rsqrt(var + EPS) * gamma_ref[...]
    out_ref[...] = ((y2 - mean) * scale + beta_ref[...]).astype(out_ref.dtype)


@jax.jit
def model_tanh_forward(x_nchw, w1_hwio, b1, w2_io, b2, gamma, beta):
    # ---- glue: im2col directly in the transposed (K, P) layout from CHW ----
    x_chw = x_nchw.reshape(C_IN, H, W)                            # N == 1
    xpad = jnp.pad(x_chw, ((0, 0), (1, 1), (1, 1)))               # (C, H+2, W+2)
    taps = [xpad[:, kh:kh + H, kw:kw + W]                         # each (C, H, W)
            for kh in range(3) for kw in range(3)]
    patches_t = jnp.stack(taps, axis=0).reshape(K, P)             # k=(kh,kw,c), p=(h,w)

    w1_t = w1_hwio.reshape(K, C1).T                               # (C1, K)
    w2_t = w2_io.T                                                # (C2, C1)
    b1_c = b1.reshape(C1, 1)
    b2_c = b2.reshape(C2, 1)
    gamma_c = gamma.reshape(C2, 1)
    beta_c = beta.reshape(C2, 1)

    cost = pl.CostEstimate(
        flops=2 * P * K * C1 + 2 * P * C1 * C2,
        transcendentals=C2,
        bytes_accessed=4 * (K * P + C1 * K + C1 + C2 * C1 + 3 * C2 + C2 * P),
    )

    vmem_spec = pl.BlockSpec(memory_space=pltpu.MemorySpace.VMEM)
    out_t = pl.pallas_call(
        fused_kernel,
        out_shape=jax.ShapeDtypeStruct((C2, P), jnp.float32),
        in_specs=[vmem_spec] * 7,
        out_specs=vmem_spec,
        cost_estimate=cost,
    )(patches_t, w1_t, b1_c, w2_t, b2_c, gamma_c, beta_c)

    # ---- glue: restore the PyTorch output layout (H, C2, N, W) ----
    out = out_t.reshape(C2, H, W)
    return jnp.transpose(out, (1, 0, 2))[:, :, None, :]           # (H, C2, 1, W)


def reference_forward(x_nchw, w1_hwio, b1, w2_io, b2, gamma, beta):
    """Pure-JAX reference mirroring the PyTorch forward semantics."""
    x = jnp.transpose(x_nchw, (0, 2, 3, 1))
    y1 = jax.lax.conv_general_dilated(
        x, w1_hwio, window_strides=(1, 1), padding="SAME",
        dimension_numbers=("NHWC", "HWIO", "NHWC")) + b1
    y1 = jnp.maximum(y1, 0.0)                                     # relu (commutes with transpose)
    y2 = jnp.einsum("nhwc,cd->nhwd", y1, w2_io) + b2              # 1x1 conv
    mean = jnp.mean(y2, axis=(0, 1, 2), keepdims=True)
    var = jnp.mean((y2 - mean) ** 2, axis=(0, 1, 2), keepdims=True)   # biased
    y3 = (y2 - mean) * jax.lax.rsqrt(var + EPS) * gamma + beta
    return jnp.transpose(y3, (1, 3, 0, 2))                        # (H, C2, N, W)


if __name__ == "__main__":
    key = jax.random.PRNGKey(0)
    kx, kw1, kb1, kw2, kb2, kg, kb = jax.random.split(key, 7)

    x = jax.random.normal(kx, (N, C_IN, H, W), dtype=jnp.float32)
    w1 = jax.random.normal(kw1, (3, 3, C_IN, C1), dtype=jnp.float32) * 0.1   # HWIO
    b1 = jax.random.normal(kb1, (C1,), dtype=jnp.float32) * 0.1
    w2 = jax.random.normal(kw2, (C1, C2), dtype=jnp.float32) * 0.1
    b2 = jax.random.normal(kb2, (C2,), dtype=jnp.float32) * 0.1
    gamma = 1.0 + 0.1 * jax.random.normal(kg, (C2,), dtype=jnp.float32)
    beta = 0.1 * jax.random.normal(kb, (C2,), dtype=jnp.float32)

    out = jax.block_until_ready(model_tanh_forward(x, w1, b1, w2, b2, gamma, beta))
    ref = reference_forward(x, w1, b1, w2, b2, gamma, beta)

    assert out.shape == (H, C2, N, W), out.shape
    assert jnp.allclose(out, ref, atol=1e-4, rtol=1e-4), "mismatch vs reference"

    print("KERNEL_OK")
</pallas_src>

<mosaic_0001>
module attributes {stable_mosaic.version = 11 : i64} {
  func.func @fused_kernel(%arg0: memref<27x256xf32, #tpu.memory_space<vmem>>, %arg1: memref<16x27xf32, #tpu.memory_space<vmem>>, %arg2: memref<16x1xf32, #tpu.memory_space<vmem>>, %arg3: memref<32x16xf32, #tpu.memory_space<vmem>>, %arg4: memref<32x1xf32, #tpu.memory_space<vmem>>, %arg5: memref<32x1xf32, #tpu.memory_space<vmem>>, %arg6: memref<32x1xf32, #tpu.memory_space<vmem>>, %arg7: memref<32x256xf32, #tpu.memory_space<vmem>>) attributes {dimension_semantics = [], scalar_prefetch = 0 : i64, scratch_operands = 0 : i64, tpu.core_type = #tpu.core_type<tc>} {
    %c0 = arith.constant 0 : index
    %c0_0 = arith.constant 0 : index
    %0 = vector.load %arg1[%c0, %c0_0] : memref<16x27xf32, #tpu.memory_space<vmem>>, vector<16x27xf32>
    %c0_1 = arith.constant 0 : index
    %c0_2 = arith.constant 0 : index
    %1 = vector.load %arg0[%c0_1, %c0_2] : memref<27x256xf32, #tpu.memory_space<vmem>>, vector<27x256xf32>
    %cst = arith.constant dense<0.000000e+00> : vector<16x256xf32>
    %2 = tpu.matmul %0, %1, %cst {dimension_numbers = #tpu.dot_dimension_numbers<[1], [0], [0], [1], [0, 0, 1, 1], [], []>} : vector<16x27xf32>, vector<27x256xf32>, vector<16x256xf32> -> vector<16x256xf32>
    %c0_3 = arith.constant 0 : index
    %c0_4 = arith.constant 0 : index
    %3 = vector.load %arg2[%c0_3, %c0_4] : memref<16x1xf32, #tpu.memory_space<vmem>>, vector<16x1xf32>
    %4 = vector.broadcast %3 : vector<16x1xf32> to vector<16x256xf32>
    %5 = arith.addf %2, %4 : vector<16x256xf32>
    %cst_5 = arith.constant 0.000000e+00 : f32
    %6 = vector.broadcast %cst_5 : f32 to vector<16x256xf32>
    %7 = arith.maximumf %5, %6 : vector<16x256xf32>
    %c0_6 = arith.constant 0 : index
    %c0_7 = arith.constant 0 : index
    %8 = vector.load %arg3[%c0_6, %c0_7] : memref<32x16xf32, #tpu.memory_space<vmem>>, vector<32x16xf32>
    %cst_8 = arith.constant dense<0.000000e+00> : vector<32x256xf32>
    %9 = tpu.matmul %8, %7, %cst_8 {dimension_numbers = #tpu.dot_dimension_numbers<[1], [0], [0], [1], [0, 0, 1, 1], [], []>} : vector<32x16xf32>, vector<16x256xf32>, vector<32x256xf32> -> vector<32x256xf32>
    %c0_9 = arith.constant 0 : index
    %c0_10 = arith.constant 0 : index
    %10 = vector.load %arg4[%c0_9, %c0_10] : memref<32x1xf32, #tpu.memory_space<vmem>>, vector<32x1xf32>
    %11 = vector.broadcast %10 : vector<32x1xf32> to vector<32x256xf32>
    %12 = arith.addf %9, %11 : vector<32x256xf32>
    %cst_11 = arith.constant dense<0.000000e+00> : vector<32xf32>
    %13 = vector.multi_reduction <add>, %12, %cst_11 [1] : vector<32x256xf32> to vector<32xf32>
    %14 = vector.shape_cast %13 : vector<32xf32> to vector<32x1xf32>
    %cst_12 = arith.constant 3.906250e-03 : f32
    %15 = vector.broadcast %cst_12 : f32 to vector<32x1xf32>
    %16 = arith.mulf %14, %15 : vector<32x1xf32>
    %17 = arith.mulf %12, %12 : vector<32x256xf32>
    %cst_13 = arith.constant dense<0.000000e+00> : vector<32xf32>
    %18 = vector.multi_reduction <add>, %17, %cst_13 [1] : vector<32x256xf32> to vector<32xf32>
    %19 = vector.shape_cast %18 : vector<32xf32> to vector<32x1xf32>
    %cst_14 = arith.constant 3.906250e-03 : f32
    %20 = vector.broadcast %cst_14 : f32 to vector<32x1xf32>
    %21 = arith.mulf %19, %20 : vector<32x1xf32>
    %22 = arith.mulf %16, %16 : vector<32x1xf32>
    %23 = arith.subf %21, %22 : vector<32x1xf32>
    %cst_15 = arith.constant 9.99999974E-6 : f32
    %24 = vector.broadcast %cst_15 : f32 to vector<32x1xf32>
    %25 = arith.addf %23, %24 : vector<32x1xf32>
    %26 = math.rsqrt %25 : vector<32x1xf32>
    %c0_16 = arith.constant 0 : index
    %c0_17 = arith.constant 0 : index
    %27 = vector.load %arg5[%c0_16, %c0_17] : memref<32x1xf32, #tpu.memory_space<vmem>>, vector<32x1xf32>
    %28 = arith.mulf %26, %27 : vector<32x1xf32>
    %29 = vector.broadcast %16 : vector<32x1xf32> to vector<32x256xf32>
    %30 = arith.subf %12, %29 : vector<32x256xf32>
    %31 = vector.broadcast %28 : vector<32x1xf32> to vector<32x256xf32>
    %32 = arith.mulf %30, %31 : vector<32x256xf32>
    %c0_18 = arith.constant 0 : index
    %c0_19 = arith.constant 0 : index
    %33 = vector.load %arg6[%c0_18, %c0_19] : memref<32x1xf32, #tpu.memory_space<vmem>>, vector<32x1xf32>
    %34 = vector.broadcast %33 : vector<32x1xf32> to vector<32x256xf32>
    %35 = arith.addf %32, %34 : vector<32x256xf32>
    %c0_20 = arith.constant 0 : index
    %c0_21 = arith.constant 0 : index
    %36 = vector.load %arg7[%c0_20, %c0_21] : memref<32x256xf32, #tpu.memory_space<vmem>>, vector<32x256xf32>
    tpu.vector_store %arg7[%c0_20, %c0_21], %35 {strides = array<i32>} : memref<32x256xf32, #tpu.memory_space<vmem>>, vector<32x256xf32>,
    return
  }
}

</mosaic_0001>

<llo_original>
// kernel: model_tanh_forward.1
$region0: #{model_tanh_forward.1}
  #allocation0 [shape = 'u32[]', space=smem, size = 0x4, offset = 0x4, fixed_abs, tag = 'smem constant byte address 0x4 - core index']
  #allocation1 [shape = 'u32[72,128]{1,0:T(1,128)}', space=vmem, size = 0x9000, scoped, tag = 'internal scratch']
  %s0 = inlined_call_operand.vmem [shape: f32[27,256], index: 0, kind: input, shape index: {}]
  %s1 = inlined_call_operand.vmem [shape: f32[16,27], index: 1, kind: input, shape index: {}]
  %s2 = inlined_call_operand.vmem [shape: f32[16,1], index: 2, kind: input, shape index: {}]
  %s3 = inlined_call_operand.vmem [shape: f32[32,16], index: 3, kind: input, shape index: {}]
  %s4 = inlined_call_operand.vmem [shape: f32[32,1], index: 4, kind: input, shape index: {}]
  %s5 = inlined_call_operand.vmem [shape: f32[32,1], index: 5, kind: input, shape index: {}]
  %s6 = inlined_call_operand.vmem [shape: f32[32,1], index: 6, kind: input, shape index: {}]
  %s7 = inlined_call_operand.vmem [shape: f32[32,256], index: 7, kind: output, shape index: {}]
  %s8 = sld [smem:[#allocation0]]
  $region38: #{model_tanh_forward.1} parent=0
    _
  %s10 = ssub.s32 1, %s8
  %s11 = scalar_select 0, %s10, %s8
  // Predicated region
  $region2: #{model_tanh_forward.1} parent=0 // pred_check
    _
  $region3: #{model_tanh_forward.1} parent=0 // pred_check_branch
    %13 = sbr.rel (0) target = $region5
  $region4: #{model_tanh_forward.1} parent=0 // pred_region
    _
  $region5: #{model_tanh_forward.1} parent=0 // pred_fallthru
    _
  // Predicated region
  $region6: #{model_tanh_forward.1} parent=0 // pred_check
    _
  $region7: #{model_tanh_forward.1} parent=0 // pred_check_branch
    %15 = sbr.rel (0) target = $region9
  $region8: #{model_tanh_forward.1} parent=0 // pred_region
    _
  $region9: #{model_tanh_forward.1} parent=0 // pred_fallthru
    _
  // Predicated region
  $region10: #{model_tanh_forward.1} parent=0 // pred_check
    _
  $region11: #{model_tanh_forward.1} parent=0 // pred_check_branch
    %17 = sbr.rel (0) target = $region13
  $region12: #{model_tanh_forward.1} parent=0 // pred_region
    _
  $region13: #{model_tanh_forward.1} parent=0 // pred_fallthru
    _
  // Predicated region
  $region14: #{model_tanh_forward.1} parent=0 // pred_check
    _
  $region15: #{model_tanh_forward.1} parent=0 // pred_check_branch
    %19 = sbr.rel (0) target = $region17
  $region16: #{model_tanh_forward.1} parent=0 // pred_region
    _
  $region17: #{model_tanh_forward.1} parent=0 // pred_fallthru
    _
  // Predicated region
  $region18: #{model_tanh_forward.1} parent=0 // pred_check
    _
  $region19: #{model_tanh_forward.1} parent=0 // pred_check_branch
    %21 = sbr.rel (0) target = $region21
  $region20: #{model_tanh_forward.1} parent=0 // pred_region
    _
  $region21: #{model_tanh_forward.1} parent=0 // pred_fallthru
    _
  // Predicated region
  $region22: #{model_tanh_forward.1} parent=0 // pred_check
    _
  $region23: #{model_tanh_forward.1} parent=0 // pred_check_branch
    %23 = sbr.rel (0) target = $region25
  $region24: #{model_tanh_forward.1} parent=0 // pred_region
    _
  $region25: #{model_tanh_forward.1} parent=0 // pred_fallthru
    _
  // Predicated region
  $region26: #{model_tanh_forward.1} parent=0 // pred_check
    _
  $region27: #{model_tanh_forward.1} parent=0 // pred_check_branch
    %25 = sbr.rel (0) target = $region29
  $region28: #{model_tanh_forward.1} parent=0 // pred_region
    _
  $region29: #{model_tanh_forward.1} parent=0 // pred_fallthru
    _
  %v26 = vld [vmem:[%s1] sm:$0xff]
  %v27 = vld [vmem:[%s1 + $0x8] sm:$0xff]
  %v28 = vld [vmem:[%s0] sm:$0xff]
  %v29 = vld [vmem:[%s0 + $0x8] sm:$0xff]
  %v30 = vld [vmem:[%s0 + $0x10] sm:$0xff]
  %v31 = vld [vmem:[%s0 + $0x18] sm:$0xff]
  %v32 = vld [vmem:[%s0 + $0x20] sm:$0xff]
  %v33 = vld [vmem:[%s0 + $0x28] sm:$0xff]
  %v34 = vld [vmem:[%s0 + $0x30] sm:$0x7]
  %v35 = vld [vmem:[%s0 + $0x38] sm:$0x7]
  %v36 = vld [vmem:[%s2] sm:$0xff]
  %v37 = vld [vmem:[%s2 + $0x8] sm:$0xff]
  %39 = vset.pattern.permute.xlu0 0
  %40 = vperm.xlu0 %39, %v36
  %v41 = vpop.permute.xlu0 %40
  %44 = vset.pattern.permute.xlu0 0
  %45 = vperm.xlu0 %44, %v37
  %v46 = vpop.permute.xlu0 %45
  %vm48 = vcmask 220160
  %v50 = vsel %vm48, %v26, 0
  %v53 = vsel %vm48, %v27, 0
  %vm55 = vcmask 1042432
  %v57 = vsel %vm55, %v34, 0
  %v60 = vsel %vm55, %v35, 0
  %62 = vmatpush.msra.mxu0 0.0
  %63 = vmatpush.msra.mxu0 0.0
  %64 = vmatpush.msra.mxu0 0.0
  %65 = vmatpush.msra.mxu0 0.0
  %66 = vmatpush.msra.mxu0 0.0
  %67 = vmatpush.msra.mxu0 0.0
  %68 = vmatpush.msra.mxu0 0.0
  %69 = vmatpush.msra.mxu0 0.0
  %70 = vmatpush.msra.mxu0 0.0
  %71 = vmatpush.msra.mxu0 0.0
  %72 = vmatpush.msra.mxu0 0.0
  %73 = vmatpush.msra.mxu0 0.0
  %74 = vmatpush.msra.mxu0 %v57
  %75 = vmatpush.msra.mxu0 %v32
  %76 = vmatpush.msra.mxu0 %v30
  %77 = vmatpush.msra.mxu0 %v28
  %78 = vmatmul.f32.gmra.mxu0 %v50
  %v79 = vpop.f32.mrf.mxu0
  %v80 = vadd.f32 %v41, %v79
  %81 = vmatmul.f32.gmra.mxu0 %v53
  %v82 = vpop.f32.mrf.mxu0
  %v83 = vadd.f32 %v46, %v82
  %84 = vdwg.mxu0
  %85 = vmatpush.msra.mxu0 0.0
  %86 = vmatpush.msra.mxu0 0.0
  %87 = vmatpush.msra.mxu0 0.0
  %88 = vmatpush.msra.mxu0 0.0
  %89 = vmatpush.msra.mxu0 0.0
  %90 = vmatpush.msra.mxu0 0.0
  %91 = vmatpush.msra.mxu0 0.0
  %92 = vmatpush.msra.mxu0 0.0
  %93 = vmatpush.msra.mxu0 0.0
  %94 = vmatpush.msra.mxu0 0.0
  %95 = vmatpush.msra.mxu0 0.0
  %96 = vmatpush.msra.mxu0 0.0
  %97 = vmatpush.msra.mxu0 %v60
  %98 = vmatpush.msra.mxu0 %v33
  %99 = vmatpush.msra.mxu0 %v31
  %100 = vmatpush.msra.mxu0 %v29
  %101 = vmatmul.f32.gmra.mxu0 %v50
  %v102 = vpop.f32.mrf.mxu0
  %v103 = vadd.f32 %v41, %v102
  %104 = vmatmul.f32.gmra.mxu0 %v53
  %v105 = vpop.f32.mrf.mxu0
  %v106 = vadd.f32 %v46, %v105
  %107 = vdwg.mxu0
  %v108 = vmax.f32 %v80, 0.0
  %v109 = vmax.f32 %v103, 0.0
  %v110 = vmax.f32 %v83, 0.0
  %v111 = vmax.f32 %v106, 0.0
  %v112 = vld [vmem:[%s3] sm:$0xff]
  %v113 = vld [vmem:[%s3 + $0x8] sm:$0xff]
  %v114 = vld [vmem:[%s3 + $0x10] sm:$0xff]
  %v115 = vld [vmem:[%s3 + $0x18] sm:$0xff]
  %v116 = vld [vmem:[%s4] sm:$0xff]
  %v117 = vld [vmem:[%s4 + $0x8] sm:$0xff]
  %v118 = vld [vmem:[%s4 + $0x10] sm:$0xff]
  %v119 = vld [vmem:[%s4 + $0x18] sm:$0xff]
  %121 = vset.pattern.permute.xlu0 0
  %122 = vperm.xlu0 %121, %v116
  %v123 = vpop.permute.xlu0 %122
  %126 = vset.pattern.permute.xlu0 0
  %127 = vperm.xlu0 %126, %v117
  %v128 = vpop.permute.xlu0 %127
  %131 = vset.pattern.permute.xlu0 0
  %132 = vperm.xlu0 %131, %v118
  %v133 = vpop.permute.xlu0 %132
  %136 = vset.pattern.permute.xlu0 0
  %137 = vperm.xlu0 %136, %v119
  %v138 = vpop.permute.xlu0 %137
  %vm140 = vcmask 130048
  %v142 = vsel %vm140, %v112, 0
  %v145 = vsel %vm140, %v113, 0
  %v148 = vsel %vm140, %v114, 0
  %v151 = vsel %vm140, %v115, 0
  %153 = vmatpush.msra.mxu0 0.0
  %154 = vmatpush.msra.mxu0 0.0
  %155 = vmatpush.msra.mxu0 0.0
  %156 = vmatpush.msra.mxu0 0.0
  %157 = vmatpush.msra.mxu0 0.0
  %158 = vmatpush.msra.mxu0 0.0
  %159 = vmatpush.msra.mxu0 0.0
  %160 = vmatpush.msra.mxu0 0.0
  %161 = vmatpush.msra.mxu0 0.0
  %162 = vmatpush.msra.mxu0 0.0
  %163 = vmatpush.msra.mxu0 0.0
  %164 = vmatpush.msra.mxu0 0.0
  %165 = vmatpush.msra.mxu0 0.0
  %166 = vmatpush.msra.mxu0 0.0
  %167 = vmatpush.msra.mxu0 %v110
  %168 = vmatpush.msra.mxu0 %v108
  %169 = vmatmul.f32.gmra.mxu0 %v142
  %v170 = vpop.f32.mrf.mxu0
  %v171 = vadd.f32 %v123, %v170
  %172 = vmatmul.f32.gmra.mxu0 %v145
  %v173 = vpop.f32.mrf.mxu0
  %v174 = vadd.f32 %v128, %v173
  %175 = vmatmul.f32.gmra.mxu0 %v148
  %v176 = vpop.f32.mrf.mxu0
  %v177 = vadd.f32 %v133, %v176
  %178 = vmatmul.f32.gmra.mxu0 %v151
  %v179 = vpop.f32.mrf.mxu0
  %v180 = vadd.f32 %v138, %v179
  %181 = vdwg.mxu0
  %182 = vmatpush.msra.mxu0 0.0
  %183 = vmatpush.msra.mxu0 0.0
  %184 = vmatpush.msra.mxu0 0.0
  %185 = vmatpush.msra.mxu0 0.0
  %186 = vmatpush.msra.mxu0 0.0
  %187 = vmatpush.msra.mxu0 0.0
  %188 = vmatpush.msra.mxu0 0.0
  %189 = vmatpush.msra.mxu0 0.0
  %190 = vmatpush.msra.mxu0 0.0
  %191 = vmatpush.msra.mxu0 0.0
  %192 = vmatpush.msra.mxu0 0.0
  %193 = vmatpush.msra.mxu0 0.0
  %194 = vmatpush.msra.mxu0 0.0
  %195 = vmatpush.msra.mxu0 0.0
  %196 = vmatpush.msra.mxu0 %v111
  %197 = vmatpush.msra.mxu0 %v109
  %198 = vmatmul.f32.gmra.mxu0 %v142
  %v199 = vpop.f32.mrf.mxu0
  %v200 = vadd.f32 %v123, %v199
  %201 = vmatmul.f32.gmra.mxu0 %v145
  %v202 = vpop.f32.mrf.mxu0
  %v203 = vadd.f32 %v128, %v202
  %204 = vmatmul.f32.gmra.mxu0 %v148
  %v205 = vpop.f32.mrf.mxu0
  %v206 = vadd.f32 %v133, %v205
  %207 = vmatmul.f32.gmra.mxu0 %v151
  %v208 = vpop.f32.mrf.mxu0
  %v209 = vadd.f32 %v138, %v208
  %210 = vdwg.mxu0
  %v211 = vadd.f32 %v171, %v200
  %212 = vadd.xlane.f32.xlu0 %v211
  %v213 = vpop.xlane.xlu0 %212
  %v214 = vadd.f32 %v174, %v203
  %215 = vadd.xlane.f32.xlu0 %v214
  %v216 = vpop.xlane.xlu0 %215
  %v217 = vadd.f32 %v177, %v206
  %218 = vadd.xlane.f32.xlu0 %v217
  %v219 = vpop.xlane.xlu0 %218
  %v220 = vadd.f32 %v180, %v209
  %221 = vadd.xlane.f32.xlu0 %v220
  %v222 = vpop.xlane.xlu0 %221
  %v223 = vmul.f32 %v213, 0.00390625
  %v224 = vmul.f32 %v216, 0.00390625
  %v225 = vmul.f32 %v219, 0.00390625
  %v226 = vmul.f32 %v222, 0.00390625
  %v227 = vmul.f32 %v171, %v171
  %v228 = vmul.f32 %v200, %v200
  %v229 = vmul.f32 %v174, %v174
  %v230 = vmul.f32 %v203, %v203
  %v231 = vmul.f32 %v177, %v177
  %v232 = vmul.f32 %v206, %v206
  %v233 = vmul.f32 %v180, %v180
  %v234 = vmul.f32 %v209, %v209
  %v235 = vadd.f32 %v227, %v228
  %236 = vadd.xlane.f32.xlu0 %v235
  %v237 = vpop.xlane.xlu0 %236
  %v238 = vadd.f32 %v229, %v230
  %239 = vadd.xlane.f32.xlu0 %v238
  %v240 = vpop.xlane.xlu0 %239
  %v241 = vadd.f32 %v231, %v232
  %242 = vadd.xlane.f32.xlu0 %v241
  %v243 = vpop.xlane.xlu0 %242
  %v244 = vadd.f32 %v233, %v234
  %245 = vadd.xlane.f32.xlu0 %v244
  %v246 = vpop.xlane.xlu0 %245
  %v247 = vmul.f32 %v237, 0.00390625
  %v248 = vmul.f32 %v240, 0.00390625
  %v249 = vmul.f32 %v243, 0.00390625
  %v250 = vmul.f32 %v246, 0.00390625
  %v251 = vmul.f32 %v223, %v223
  %v252 = vmul.f32 %v224, %v224
  %v253 = vmul.f32 %v225, %v225
  %v254 = vmul.f32 %v226, %v226
  %v255 = vsub.f32 %v247, %v251
  %v256 = vsub.f32 %v248, %v252
  %v257 = vsub.f32 %v249, %v253
  %v258 = vsub.f32 %v250, %v254
  %v259 = vadd.f32 %v255, 1e-05
  %v260 = vadd.f32 %v256, 1e-05
  %v261 = vadd.f32 %v257, 1e-05
  %v262 = vadd.f32 %v258, 1e-05
  %v263 = vrsqrt.pop %v259
  %v264 = vmul.f32 %v263, %v259
  %v265 = vmul.f32 %v264, %v263
  %v266 = vmul.f32 0.5, %v265
  %v267 = vsub.f32 1.5, %v266
  %v268 = vmul.f32 %v263, %v267
  %vm269 = vweird.f32 %v259
  %vm270 = vweird.f32 %v263
  %vm271 = vmor %vm269, %vm270
  %v272 = vsel %vm271, %v263, %v268
  %v273 = vrsqrt.pop %v260
  %v274 = vmul.f32 %v273, %v260
  %v275 = vmul.f32 %v274, %v273
  %v276 = vmul.f32 0.5, %v275
  %v277 = vsub.f32 1.5, %v276
  %v278 = vmul.f32 %v273, %v277
  %vm279 = vweird.f32 %v260
  %vm280 = vweird.f32 %v273
  %vm281 = vmor %vm279, %vm280
  %v282 = vsel %vm281, %v273, %v278
  %v283 = vrsqrt.pop %v261
  %v284 = vmul.f32 %v283, %v261
  %v285 = vmul.f32 %v284, %v283
  %v286 = vmul.f32 0.5, %v285
  %v287 = vsub.f32 1.5, %v286
  %v288 = vmul.f32 %v283, %v287
  %vm289 = vweird.f32 %v261
  %vm290 = vweird.f32 %v283
  %vm291 = vmor %vm289, %vm290
  %v292 = vsel %vm291, %v283, %v288
  %v293 = vrsqrt.pop %v262
  %v294 = vmul.f32 %v293, %v262
  %v295 = vmul.f32 %v294, %v293
  %v296 = vmul.f32 0.5, %v295
  %v297 = vsub.f32 1.5, %v296
  %v298 = vmul.f32 %v293, %v297
  %vm299 = vweird.f32 %v262
  %vm300 = vweird.f32 %v293
  %vm301 = vmor %vm299, %vm300
  %v302 = vsel %vm301, %v293, %v298
  %v303 = vld [vmem:[%s5] sm:$0xff]
  %v304 = vld [vmem:[%s5 + $0x8] sm:$0xff]
  %v305 = vld [vmem:[%s5 + $0x10] sm:$0xff]
  %v306 = vld [vmem:[%s5 + $0x18] sm:$0xff]
  %v307 = vmul.f32 %v272, %v303
  %v308 = vmul.f32 %v282, %v304
  %v309 = vmul.f32 %v292, %v305
  %v310 = vmul.f32 %v302, %v306
  %v311 = vsub.f32 %v171, %v223
  %v312 = vsub.f32 %v200, %v223
  %v313 = vsub.f32 %v174, %v224
  %v314 = vsub.f32 %v203, %v224
  %v315 = vsub.f32 %v177, %v225
  %v316 = vsub.f32 %v206, %v225
  %v317 = vsub.f32 %v180, %v226
  %v318 = vsub.f32 %v209, %v226
  %320 = vset.pattern.permute.xlu0 0
  %321 = vperm.xlu0 %320, %v307
  %v322 = vpop.permute.xlu0 %321
  %325 = vset.pattern.permute.xlu0 0
  %326 = vperm.xlu0 %325, %v308
  %v327 = vpop.permute.xlu0 %326
  %330 = vset.pattern.permute.xlu0 0
  %331 = vperm.xlu0 %330, %v309
  %v332 = vpop.permute.xlu0 %331
  %335 = vset.pattern.permute.xlu0 0
  %336 = vperm.xlu0 %335, %v310
  %v337 = vpop.permute.xlu0 %336
  %v339 = vmul.f32 %v311, %v322
  %v340 = vmul.f32 %v312, %v322
  %v341 = vmul.f32 %v313, %v327
  %v342 = vmul.f32 %v314, %v327
  %v343 = vmul.f32 %v315, %v332
  %v344 = vmul.f32 %v316, %v332
  %v345 = vmul.f32 %v317, %v337
  %v346 = vmul.f32 %v318, %v337
  %v347 = vld [vmem:[%s6] sm:$0xff]
  %v348 = vld [vmem:[%s6 + $0x8] sm:$0xff]
  %v349 = vld [vmem:[%s6 + $0x10] sm:$0xff]
  %v350 = vld [vmem:[%s6 + $0x18] sm:$0xff]
  %352 = vset.pattern.permute.xlu0 0
  %353 = vperm.xlu0 %352, %v347
  %v354 = vpop.permute.xlu0 %353
  %357 = vset.pattern.permute.xlu0 0
  %358 = vperm.xlu0 %357, %v348
  %v359 = vpop.permute.xlu0 %358
  %362 = vset.pattern.permute.xlu0 0
  %363 = vperm.xlu0 %362, %v349
  %v364 = vpop.permute.xlu0 %363
  %367 = vset.pattern.permute.xlu0 0
  %368 = vperm.xlu0 %367, %v350
  %v369 = vpop.permute.xlu0 %368
  %v371 = vadd.f32 %v339, %v354
  %v372 = vadd.f32 %v340, %v354
  %v373 = vadd.f32 %v341, %v359
  %v374 = vadd.f32 %v342, %v359
  %v375 = vadd.f32 %v343, %v364
  %v376 = vadd.f32 %v344, %v364
  %v377 = vadd.f32 %v345, %v369
  %v378 = vadd.f32 %v346, %v369
  %379 = vst [vmem:[%s7] sm:$0xff] %v371
  %380 = vst [vmem:[%s7 + $0x8] sm:$0xff] %v372
  %381 = vst [vmem:[%s7 + $0x10] sm:$0xff] %v373
  %382 = vst [vmem:[%s7 + $0x18] sm:$0xff] %v374
  %383 = vst [vmem:[%s7 + $0x20] sm:$0xff] %v375
  %384 = vst [vmem:[%s7 + $0x28] sm:$0xff] %v376
  %385 = vst [vmem:[%s7 + $0x30] sm:$0xff] %v377
  %386 = vst [vmem:[%s7 + $0x38] sm:$0xff] %v378
  // Predicated region
  $region30: #{model_tanh_forward.1} parent=0 // pred_check
    _
  $region31: #{model_tanh_forward.1} parent=0 // pred_check_branch
    %388 = sbr.rel (0) target = $region33
  $region32: #{model_tanh_forward.1} parent=0 // pred_region
    _
  $region33: #{model_tanh_forward.1} parent=0 // pred_fallthru
    _
  // Predicated region
  $region34: #{model_tanh_forward.1} parent=0 // pred_check
    _
  $region35: #{model_tanh_forward.1} parent=0 // pred_check_branch
    %390 = sbr.rel (0) target = $region37
  $region36: #{model_tanh_forward.1} parent=0 // pred_region
    _
  $region37: #{model_tanh_forward.1} parent=0 // pred_fallthru
    _

</llo_original>
